<compile_context>
chip_gen: v7x
topology: tpu7x:2x2x1
jax: 0.10.0
libtpu: 0.0.40
codegen_flags: <defaults>
</compile_context>

<pallas_src>
import jax
import jax.numpy as jnp
from jax.experimental import pallas as pl
from jax.experimental.pallas import tpu as pltpu

NUM_STATE = 8          # `numState` in the PyTorch script
NUM_ACTIONS = 4        # constructor argument `num_actions`
HIDDEN = (80, 120, 80)
MAX_TILE_B = 512       # max batch-tile width (lanes); multiple of 128 when tiling


def _select_tile(batch):
    """Batch-tile (lane) width.

    Whole batch in a single block when it fits (block dims equal to full array
    dims are always legal).  For larger batches use multiple-of-128 tiles,
    preferring one that gives an EVEN number of grid steps so v7x can split
    the grid evenly across its two TensorCores."""
    if batch <= MAX_TILE_B:
        return batch
    for t in range(MAX_TILE_B, 0, -128):          # 512, 384, 256, 128
        if pl.cdiv(batch, t) % 2 == 0:
            return t
    return MAX_TILE_B


def _make_mlp_kernel(tile_b, n_chunks):
    """Whole MLP hot path for one (features, tile_b) batch tile."""
    chunk = tile_b // n_chunks                    # 128-aligned when n_chunks == 2

    def kernel(x_ref, w1_ref, b1_ref, w2_ref, b2_ref,
               w3_ref, b3_ref, w4_ref, b4_ref, o_ref):
        cdt = w1_ref.dtype                        # matmul operand dtype (f32 / bf16)
        # Hoist bias loads: one VMEM read per bias per grid step.
        b1 = b1_ref[...]
        b2 = b2_ref[...]
        b3 = b3_ref[...]
        b4 = b4_ref[...]

        # Static (unrolled) loop -> independent sub-chains in one basic block,
        # letting the LLO scheduler interleave MXU and VPU work across chunks.
        for c in range(n_chunks):
            lo = c * chunk
            xt = x_ref[:, lo:lo + chunk]                       # (8, chunk)

            h = jnp.dot(w1_ref[...], xt,                       # (80, chunk)
                        preferred_element_type=jnp.float32)
            h = jnp.maximum(h + b1, 0.0)

            h = jnp.dot(w2_ref[...], h.astype(cdt),            # (120, chunk)
                        preferred_element_type=jnp.float32)
            h = jnp.maximum(h + b2, 0.0)

            h = jnp.dot(w3_ref[...], h.astype(cdt),            # (80, chunk)
                        preferred_element_type=jnp.float32)
            h = jnp.maximum(h + b3, 0.0)

            h = jnp.dot(w4_ref[...], h.astype(cdt),            # (A, chunk)
                        preferred_element_type=jnp.float32)
            o_ref[:, lo:lo + chunk] = (h + b4).astype(o_ref.dtype)

    return kernel


def net_forward(x, params, compute_dtype=jnp.float32):
    """JAX/Pallas equivalent of Net.forward.  `x` may have any leading shape;
    it is flattened to (-1, NUM_STATE) exactly like x.view(-1, numState).
    Weights are torch-native (out, in); biases are (out, 1)."""
    w1, b1, w2, b2, w3, b3, w4, b4 = params
    num_actions = w4.shape[0]

    x2 = x.reshape(-1, NUM_STATE).astype(jnp.float32)
    batch = x2.shape[0]
    # Batch rides the lane axis: one tiny wrapper transpose (8, batch).
    xt = x2.T.astype(compute_dtype)
    if compute_dtype != jnp.float32:
        # bf16 operands for the MXU (biggest win on v5e); biases stay f32.
        w1, w2, w3, w4 = (w.astype(compute_dtype) for w in (w1, w2, w3, w4))

    tile_b = _select_tile(batch)
    grid = (pl.cdiv(batch, tile_b),)              # ragged last block is masked
    n_chunks = 2 if tile_b % 256 == 0 else 1      # keep chunk boundaries 128-aligned

    # Weights/biases (~80 KB) stay fully VMEM-resident across the grid.
    full = lambda a: pl.BlockSpec(a.shape, lambda i: (0, 0))

    flops = 2 * batch * (NUM_STATE * 80 + 80 * 120 + 120 * 80 + 80 * num_actions)
    param_bytes = sum(int(p.size) * p.dtype.itemsize
                      for p in (w1, b1, w2, b2, w3, b3, w4, b4))
    bytes_accessed = batch * (NUM_STATE + num_actions) * 4 + param_bytes

    out_t = pl.pallas_call(
        _make_mlp_kernel(tile_b, n_chunks),
        out_shape=jax.ShapeDtypeStruct((num_actions, batch), jnp.float32),
        grid=grid,
        in_specs=[
            pl.BlockSpec((NUM_STATE, tile_b), lambda i: (0, i)),
            full(w1), full(b1),
            full(w2), full(b2),
            full(w3), full(b3),
            full(w4), full(b4),
        ],
        out_specs=pl.BlockSpec((num_actions, tile_b), lambda i: (0, i)),
        compiler_params=pltpu.CompilerParams(
            dimension_semantics=("parallel",)),
        cost_estimate=pl.CostEstimate(
            flops=flops, transcendentals=0, bytes_accessed=bytes_accessed),
    )(xt, w1, b1, w2, b2, w3, b3, w4, b4)

    return out_t.T                                # (batch, num_actions)


net_forward_jit = jax.jit(net_forward, static_argnames=("compute_dtype",))


def init_params(key, num_actions=NUM_ACTIONS):
    """Deterministic init mimicking torch.nn.Linear defaults:
    U(-1/sqrt(fan_in), 1/sqrt(fan_in)); W stored torch-native (out, in),
    b stored (out, 1) so it broadcasts over the batch (lane) axis."""
    dims = (NUM_STATE,) + HIDDEN + (num_actions,)
    params = []
    for fan_in, fan_out in zip(dims[:-1], dims[1:]):
        key, kw, kb = jax.random.split(key, 3)
        bound = 1.0 / (fan_in ** 0.5)
        w = jax.random.uniform(kw, (fan_out, fan_in), jnp.float32,
                               minval=-bound, maxval=bound)
        b = jax.random.uniform(kb, (fan_out, 1), jnp.float32,
                               minval=-bound, maxval=bound)
        params += [w, b]
    return tuple(params)


def _reference(x, params):
    w1, b1, w2, b2, w3, b3, w4, b4 = params
    h = x.reshape(-1, NUM_STATE).astype(jnp.float32)
    h = jnp.maximum(h @ w1.T + b1[:, 0], 0.0)
    h = jnp.maximum(h @ w2.T + b2[:, 0], 0.0)
    h = jnp.maximum(h @ w3.T + b3[:, 0], 0.0)
    return h @ w4.T + b4[:, 0]


if __name__ == "__main__":
    key = jax.random.PRNGKey(0)
    kx, kx2, kp = jax.random.split(key, 3)
    params = init_params(kp, NUM_ACTIONS)

    # 1) Small deterministic input; forward views it as (-1, numState) = (8, 8).
    #    Exercises the single-block (no tiling, no padding) RL-acting path.
    x = jax.random.normal(kx, (2, 4, NUM_STATE), jnp.float32)
    out = jax.block_until_ready(net_forward_jit(x, params))
    ref = _reference(x, params)
    assert out.shape == (8, NUM_ACTIONS)
    assert jnp.allclose(out, ref, atol=1e-4, rtol=1e-4)

    # 2) Large non-multiple batch (1043 rows): tile 512 -> grid 3, ragged last
    #    block (19 valid lanes) masked by Pallas, two interleaved 256-lane
    #    sub-chains inside the kernel.
    xb = jax.random.normal(kx2, (1043, NUM_STATE), jnp.float32)
    outb = jax.block_until_ready(net_forward_jit(xb, params))
    refb = _reference(xb, params)
    assert outb.shape == (1043, NUM_ACTIONS)
    assert jnp.allclose(outb, refb, atol=1e-4, rtol=1e-4)

    # 3) bf16 matmul operands (v5e MXU-native), f32 accumulate + f32 bias.
    #    Looser tolerance: this is an intentional precision trade-off.
    outb16 = jax.block_until_ready(
        net_forward_jit(xb, params, compute_dtype=jnp.bfloat16))
    assert outb16.shape == (1043, NUM_ACTIONS)
    assert jnp.allclose(outb16, refb, atol=0.15, rtol=0.05)

    print("KERNEL_OK")
</pallas_src>

<mosaic_0001>
module attributes {stable_mosaic.version = 11 : i64} {
  func.func @kernel(%arg0: i32, %arg1: memref<8x8xf32, #tpu.memory_space<vmem>>, %arg2: memref<80x8xf32, #tpu.memory_space<vmem>>, %arg3: memref<80x1xf32, #tpu.memory_space<vmem>>, %arg4: memref<120x80xf32, #tpu.memory_space<vmem>>, %arg5: memref<120x1xf32, #tpu.memory_space<vmem>>, %arg6: memref<80x120xf32, #tpu.memory_space<vmem>>, %arg7: memref<80x1xf32, #tpu.memory_space<vmem>>, %arg8: memref<4x80xf32, #tpu.memory_space<vmem>>, %arg9: memref<4x1xf32, #tpu.memory_space<vmem>>, %arg10: memref<4x8xf32, #tpu.memory_space<vmem>>) attributes {dimension_semantics = [#tpu.dimension_semantics<parallel>], iteration_bounds = array<i64: 1>, scalar_prefetch = 0 : i64, scratch_operands = 0 : i64, tpu.core_type = #tpu.core_type<tc>, window_params = [{transform_indices = @transform_0, window_bounds = array<i64: 8, 8>}, {pipeline_mode = #tpu.pipeline_mode<synchronous>, transform_indices = @transform_1, window_bounds = array<i64: 80, 8>}, {pipeline_mode = #tpu.pipeline_mode<synchronous>, transform_indices = @transform_2, window_bounds = array<i64: 80, 1>}, {pipeline_mode = #tpu.pipeline_mode<synchronous>, transform_indices = @transform_3, window_bounds = array<i64: 120, 80>}, {pipeline_mode = #tpu.pipeline_mode<synchronous>, transform_indices = @transform_4, window_bounds = array<i64: 120, 1>}, {pipeline_mode = #tpu.pipeline_mode<synchronous>, transform_indices = @transform_5, window_bounds = array<i64: 80, 120>}, {pipeline_mode = #tpu.pipeline_mode<synchronous>, transform_indices = @transform_6, window_bounds = array<i64: 80, 1>}, {pipeline_mode = #tpu.pipeline_mode<synchronous>, transform_indices = @transform_7, window_bounds = array<i64: 4, 80>}, {pipeline_mode = #tpu.pipeline_mode<synchronous>, transform_indices = @transform_8, window_bounds = array<i64: 4, 1>}, {transform_indices = @transform_9, window_bounds = array<i64: 4, 8>}]} {
    %c0 = arith.constant 0 : index
    %c0_0 = arith.constant 0 : index
    %0 = vector.load %arg3[%c0, %c0_0] : memref<80x1xf32, #tpu.memory_space<vmem>>, vector<80x1xf32>
    %c0_1 = arith.constant 0 : index
    %c0_2 = arith.constant 0 : index
    %1 = vector.load %arg5[%c0_1, %c0_2] : memref<120x1xf32, #tpu.memory_space<vmem>>, vector<120x1xf32>
    %c0_3 = arith.constant 0 : index
    %c0_4 = arith.constant 0 : index
    %2 = vector.load %arg7[%c0_3, %c0_4] : memref<80x1xf32, #tpu.memory_space<vmem>>, vector<80x1xf32>
    %c0_5 = arith.constant 0 : index
    %c0_6 = arith.constant 0 : index
    %3 = vector.load %arg9[%c0_5, %c0_6] : memref<4x1xf32, #tpu.memory_space<vmem>>, vector<4x1xf32>
    %c0_7 = arith.constant 0 : index
    %c0_8 = arith.constant 0 : index
    %4 = vector.load %arg1[%c0_7, %c0_8] : memref<8x8xf32, #tpu.memory_space<vmem>>, vector<8x8xf32>
    %c0_9 = arith.constant 0 : index
    %c0_10 = arith.constant 0 : index
    %5 = vector.load %arg2[%c0_9, %c0_10] : memref<80x8xf32, #tpu.memory_space<vmem>>, vector<80x8xf32>
    %cst = arith.constant dense<0.000000e+00> : vector<80x8xf32>
    %6 = tpu.matmul %5, %4, %cst {dimension_numbers = #tpu.dot_dimension_numbers<[1], [0], [0], [1], [0, 0, 1, 1], [], []>} : vector<80x8xf32>, vector<8x8xf32>, vector<80x8xf32> -> vector<80x8xf32>
    %7 = vector.broadcast %0 : vector<80x1xf32> to vector<80x8xf32>
    %8 = arith.addf %6, %7 : vector<80x8xf32>
    %cst_11 = arith.constant 0.000000e+00 : f32
    %9 = vector.broadcast %cst_11 : f32 to vector<80x8xf32>
    %10 = arith.maximumf %8, %9 : vector<80x8xf32>
    %c0_12 = arith.constant 0 : index
    %c0_13 = arith.constant 0 : index
    %11 = vector.load %arg4[%c0_12, %c0_13] : memref<120x80xf32, #tpu.memory_space<vmem>>, vector<120x80xf32>
    %cst_14 = arith.constant dense<0.000000e+00> : vector<120x8xf32>
    %12 = tpu.matmul %11, %10, %cst_14 {dimension_numbers = #tpu.dot_dimension_numbers<[1], [0], [0], [1], [0, 0, 1, 1], [], []>} : vector<120x80xf32>, vector<80x8xf32>, vector<120x8xf32> -> vector<120x8xf32>
    %13 = vector.broadcast %1 : vector<120x1xf32> to vector<120x8xf32>
    %14 = arith.addf %12, %13 : vector<120x8xf32>
    %cst_15 = arith.constant 0.000000e+00 : f32
    %15 = vector.broadcast %cst_15 : f32 to vector<120x8xf32>
    %16 = arith.maximumf %14, %15 : vector<120x8xf32>
    %c0_16 = arith.constant 0 : index
    %c0_17 = arith.constant 0 : index
    %17 = vector.load %arg6[%c0_16, %c0_17] : memref<80x120xf32, #tpu.memory_space<vmem>>, vector<80x120xf32>
    %cst_18 = arith.constant dense<0.000000e+00> : vector<80x8xf32>
    %18 = tpu.matmul %17, %16, %cst_18 {dimension_numbers = #tpu.dot_dimension_numbers<[1], [0], [0], [1], [0, 0, 1, 1], [], []>} : vector<80x120xf32>, vector<120x8xf32>, vector<80x8xf32> -> vector<80x8xf32>
    %19 = vector.broadcast %2 : vector<80x1xf32> to vector<80x8xf32>
    %20 = arith.addf %18, %19 : vector<80x8xf32>
    %cst_19 = arith.constant 0.000000e+00 : f32
    %21 = vector.broadcast %cst_19 : f32 to vector<80x8xf32>
    %22 = arith.maximumf %20, %21 : vector<80x8xf32>
    %c0_20 = arith.constant 0 : index
    %c0_21 = arith.constant 0 : index
    %23 = vector.load %arg8[%c0_20, %c0_21] : memref<4x80xf32, #tpu.memory_space<vmem>>, vector<4x80xf32>
    %cst_22 = arith.constant dense<0.000000e+00> : vector<4x8xf32>
    %24 = tpu.matmul %23, %22, %cst_22 {dimension_numbers = #tpu.dot_dimension_numbers<[1], [0], [0], [1], [0, 0, 1, 1], [], []>} : vector<4x80xf32>, vector<80x8xf32>, vector<4x8xf32> -> vector<4x8xf32>
    %25 = vector.broadcast %3 : vector<4x1xf32> to vector<4x8xf32>
    %26 = arith.addf %24, %25 : vector<4x8xf32>
    %c0_23 = arith.constant 0 : index
    %c0_24 = arith.constant 0 : index
    %27 = vector.load %arg10[%c0_23, %c0_24] : memref<4x8xf32, #tpu.memory_space<vmem>>, vector<4x8xf32>
    tpu.vector_store %arg10[%c0_23, %c0_24], %26 {strides = array<i32>} : memref<4x8xf32, #tpu.memory_space<vmem>>, vector<4x8xf32>,
    return
  }
  func.func @transform_0(%arg0: i32) -> (i32, i32) {
    %c0_i32 = arith.constant 0 : i32
    %c0_i32_0 = arith.constant 0 : i32
    return %c0_i32, %arg0 : i32, i32
  }
  func.func @transform_1(%arg0: i32) -> (i32, i32) {
    %c0_i32 = arith.constant 0 : i32
    %c0_i32_0 = arith.constant 0 : i32
    %c0_i32_1 = arith.constant 0 : i32
    return %c0_i32, %c0_i32_0 : i32, i32
  }
  func.func @transform_2(%arg0: i32) -> (i32, i32) {
    %c0_i32 = arith.constant 0 : i32
    %c0_i32_0 = arith.constant 0 : i32
    %c0_i32_1 = arith.constant 0 : i32
    return %c0_i32, %c0_i32_0 : i32, i32
  }
  func.func @transform_3(%arg0: i32) -> (i32, i32) {
    %c0_i32 = arith.constant 0 : i32
    %c0_i32_0 = arith.constant 0 : i32
    %c0_i32_1 = arith.constant 0 : i32
    return %c0_i32, %c0_i32_0 : i32, i32
  }
  func.func @transform_4(%arg0: i32) -> (i32, i32) {
    %c0_i32 = arith.constant 0 : i32
    %c0_i32_0 = arith.constant 0 : i32
    %c0_i32_1 = arith.constant 0 : i32
    return %c0_i32, %c0_i32_0 : i32, i32
  }
  func.func @transform_5(%arg0: i32) -> (i32, i32) {
    %c0_i32 = arith.constant 0 : i32
    %c0_i32_0 = arith.constant 0 : i32
    %c0_i32_1 = arith.constant 0 : i32
    return %c0_i32, %c0_i32_0 : i32, i32
  }
  func.func @transform_6(%arg0: i32) -> (i32, i32) {
    %c0_i32 = arith.constant 0 : i32
    %c0_i32_0 = arith.constant 0 : i32
    %c0_i32_1 = arith.constant 0 : i32
    return %c0_i32, %c0_i32_0 : i32, i32
  }
  func.func @transform_7(%arg0: i32) -> (i32, i32) {
    %c0_i32 = arith.constant 0 : i32
    %c0_i32_0 = arith.constant 0 : i32
    %c0_i32_1 = arith.constant 0 : i32
    return %c0_i32, %c0_i32_0 : i32, i32
  }
  func.func @transform_8(%arg0: i32) -> (i32, i32) {
    %c0_i32 = arith.constant 0 : i32
    %c0_i32_0 = arith.constant 0 : i32
    %c0_i32_1 = arith.constant 0 : i32
    return %c0_i32, %c0_i32_0 : i32, i32
  }
  func.func @transform_9(%arg0: i32) -> (i32, i32) {
    %c0_i32 = arith.constant 0 : i32
    %c0_i32_0 = arith.constant 0 : i32
    return %c0_i32, %arg0 : i32, i32
  }
}

</mosaic_0001>

<llo_original>
// kernel: net_forward.1
$region0: #{net_forward.1}
  #allocation0 [shape = 'u32[]', space=smem, size = 0x4, offset = 0x4, fixed_abs, tag = 'smem constant byte address 0x4 - core index']
  #allocation1 [shape = 'u32[144,128]{1,0:T(1,128)}', space=vmem, size = 0x12000, scoped, tag = 'internal scratch']
  %s0 = inlined_call_operand.vmem [shape: f32[8,8], index: 0, kind: input, shape index: {}]
  %s1 = inlined_call_operand.vmem [shape: f32[80,8], index: 1, kind: input, shape index: {}]
  %s2 = inlined_call_operand.vmem [shape: f32[80,1], index: 2, kind: input, shape index: {}]
  %s3 = inlined_call_operand.vmem [shape: f32[120,80], index: 3, kind: input, shape index: {}]
  %s4 = inlined_call_operand.vmem [shape: f32[120,1], index: 4, kind: input, shape index: {}]
  %s5 = inlined_call_operand.vmem [shape: f32[80,120], index: 5, kind: input, shape index: {}]
  %s6 = inlined_call_operand.vmem [shape: f32[80,1], index: 6, kind: input, shape index: {}]
  %s7 = inlined_call_operand.vmem [shape: f32[4,80], index: 7, kind: input, shape index: {}]
  %s8 = inlined_call_operand.vmem [shape: f32[4,1], index: 8, kind: input, shape index: {}]
  %s9 = inlined_call_operand.hbm [shape: f32[4,8], index: 9, kind: output, shape index: {}]
  %s10 = sld [smem:[#allocation0]]
  $region46: #{net_forward.1} parent=0
    _
  %s12 = ssub.s32 1, %s10
  %s13 = scalar_select 0, %s12, %s10
  $region1: #{net_forward.1} parent=0
    #allocation2 [shape = 'u8[2048]{0}', space=vmem, size = 0x800, scoped, tag = 'output window, operand 0, single buffered']
    #allocation3 [shape = 's32[1]{0}', space=sflag, size = 0x4, scoped, tag = 'scoped memory for net_forward.1']
    %14 = vsyncpa [#allocation3], 0
    // Predicated region
    $region2: #{net_forward.1} parent=1 // pred_check
      _
    $region3: #{net_forward.1} parent=1 // pred_check_branch
      %16 = sbr.rel (0) target = $region5
    $region4: #{net_forward.1} parent=1 // pred_region
      _
    $region5: #{net_forward.1} parent=1 // pred_fallthru
      _
    // Predicated region
    $region6: #{net_forward.1} parent=1 // pred_check
      _
    $region7: #{net_forward.1} parent=1 // pred_check_branch
      %18 = sbr.rel (0) target = $region9
    $region8: #{net_forward.1} parent=1 // pred_region
      _
    $region9: #{net_forward.1} parent=1 // pred_fallthru
      _
    // Predicated region
    $region10: #{net_forward.1} parent=1 // pred_check
      _
    $region11: #{net_forward.1} parent=1 // pred_check_branch
      %20 = sbr.rel (0) target = $region13
    $region12: #{net_forward.1} parent=1 // pred_region
      _
    $region13: #{net_forward.1} parent=1 // pred_fallthru
      _
    // Predicated region
    $region14: #{net_forward.1} parent=1 // pred_check
      _
    $region15: #{net_forward.1} parent=1 // pred_check_branch
      %22 = sbr.rel (0) target = $region17
    $region16: #{net_forward.1} parent=1 // pred_region
      _
    $region17: #{net_forward.1} parent=1 // pred_fallthru
      _
    // Predicated region
    $region18: #{net_forward.1} parent=1 // pred_check
      _
    $region19: #{net_forward.1} parent=1 // pred_check_branch
      %24 = sbr.rel (0) target = $region21
    $region20: #{net_forward.1} parent=1 // pred_region
      _
    $region21: #{net_forward.1} parent=1 // pred_fallthru
      _
    // Predicated region
    $region22: #{net_forward.1} parent=1 // pred_check
      _
    $region23: #{net_forward.1} parent=1 // pred_check_branch
      %26 = sbr.rel (0) target = $region25
    $region24: #{net_forward.1} parent=1 // pred_region
      _
    $region25: #{net_forward.1} parent=1 // pred_fallthru
      _
    // Predicated region
    $region26: #{net_forward.1} parent=1 // pred_check
      _
    $region27: #{net_forward.1} parent=1 // pred_check_branch
      %28 = sbr.rel (0) target = $region29
    $region28: #{net_forward.1} parent=1 // pred_region
      _
    $region29: #{net_forward.1} parent=1 // pred_fallthru
      _
    // Predicated region
    $region30: #{net_forward.1} parent=1 // pred_check
      _
    $region31: #{net_forward.1} parent=1 // pred_check_branch
      %30 = sbr.rel (0) target = $region33
    $region32: #{net_forward.1} parent=1 // pred_region
      _
    $region33: #{net_forward.1} parent=1 // pred_fallthru
      _
    // Predicated region
    $region34: #{net_forward.1} parent=1 // pred_check
      _
    $region35: #{net_forward.1} parent=1 // pred_check_branch
      %32 = sbr.rel (0) target = $region37
    $region36: #{net_forward.1} parent=1 // pred_region
      _
    $region37: #{net_forward.1} parent=1 // pred_fallthru
      _
    %v33 = vld [vmem:[%s2] sm:$0xff]
    %v34 = vld [vmem:[%s2 + $0x8] sm:$0xff]
    %v35 = vld [vmem:[%s2 + $0x10] sm:$0xff]
    %v36 = vld [vmem:[%s2 + $0x18] sm:$0xff]
    %v37 = vld [vmem:[%s2 + $0x20] sm:$0xff]
    %v38 = vld [vmem:[%s2 + $0x28] sm:$0xff]
    %v39 = vld [vmem:[%s2 + $0x30] sm:$0xff]
    %v40 = vld [vmem:[%s2 + $0x38] sm:$0xff]
    %v41 = vld [vmem:[%s2 + $0x40] sm:$0xff]
    %v42 = vld [vmem:[%s2 + $0x48] sm:$0xff]
    %v43 = vld [vmem:[%s4] sm:$0xff]
    %v44 = vld [vmem:[%s4 + $0x8] sm:$0xff]
    %v45 = vld [vmem:[%s4 + $0x10] sm:$0xff]
    %v46 = vld [vmem:[%s4 + $0x18] sm:$0xff]
    %v47 = vld [vmem:[%s4 + $0x20] sm:$0xff]
    %v48 = vld [vmem:[%s4 + $0x28] sm:$0xff]
    %v49 = vld [vmem:[%s4 + $0x30] sm:$0xff]
    %v50 = vld [vmem:[%s4 + $0x38] sm:$0xff]
    %v51 = vld [vmem:[%s4 + $0x40] sm:$0xff]
    %v52 = vld [vmem:[%s4 + $0x48] sm:$0xff]
    %v53 = vld [vmem:[%s4 + $0x50] sm:$0xff]
    %v54 = vld [vmem:[%s4 + $0x58] sm:$0xff]
    %v55 = vld [vmem:[%s4 + $0x60] sm:$0xff]
    %v56 = vld [vmem:[%s4 + $0x68] sm:$0xff]
    %v57 = vld [vmem:[%s4 + $0x70] sm:$0xff]
    %v58 = vld [vmem:[%s6] sm:$0xff]
    %v59 = vld [vmem:[%s6 + $0x8] sm:$0xff]
    %v60 = vld [vmem:[%s6 + $0x10] sm:$0xff]
    %v61 = vld [vmem:[%s6 + $0x18] sm:$0xff]
    %v62 = vld [vmem:[%s6 + $0x20] sm:$0xff]
    %v63 = vld [vmem:[%s6 + $0x28] sm:$0xff]
    %v64 = vld [vmem:[%s6 + $0x30] sm:$0xff]
    %v65 = vld [vmem:[%s6 + $0x38] sm:$0xff]
    %v66 = vld [vmem:[%s6 + $0x40] sm:$0xff]
    %v67 = vld [vmem:[%s6 + $0x48] sm:$0xff]
    %v68 = vld [vmem:[%s8] sm:$0xf]
    %v69 = vld [vmem:[%s0] sm:$0xff]
    %v70 = vld [vmem:[%s1] sm:$0xff]
    %v71 = vld [vmem:[%s1 + $0x8] sm:$0xff]
    %v72 = vld [vmem:[%s1 + $0x10] sm:$0xff]
    %v73 = vld [vmem:[%s1 + $0x18] sm:$0xff]
    %v74 = vld [vmem:[%s1 + $0x20] sm:$0xff]
    %v75 = vld [vmem:[%s1 + $0x28] sm:$0xff]
    %v76 = vld [vmem:[%s1 + $0x30] sm:$0xff]
    %v77 = vld [vmem:[%s1 + $0x38] sm:$0xff]
    %v78 = vld [vmem:[%s1 + $0x40] sm:$0xff]
    %v79 = vld [vmem:[%s1 + $0x48] sm:$0xff]
    %81 = vset.pattern.permute.xlu0 0
    %82 = vperm.xlu0 %81, %v33
    %v83 = vpop.permute.xlu0 %82
    %86 = vset.pattern.permute.xlu0 0
    %87 = vperm.xlu0 %86, %v34
    %v88 = vpop.permute.xlu0 %87
    %91 = vset.pattern.permute.xlu0 0
    %92 = vperm.xlu0 %91, %v35
    %v93 = vpop.permute.xlu0 %92
    %96 = vset.pattern.permute.xlu0 0
    %97 = vperm.xlu0 %96, %v36
    %v98 = vpop.permute.xlu0 %97
    %101 = vset.pattern.permute.xlu0 0
    %102 = vperm.xlu0 %101, %v37
    %v103 = vpop.permute.xlu0 %102
    %106 = vset.pattern.permute.xlu0 0
    %107 = vperm.xlu0 %106, %v38
    %v108 = vpop.permute.xlu0 %107
    %111 = vset.pattern.permute.xlu0 0
    %112 = vperm.xlu0 %111, %v39
    %v113 = vpop.permute.xlu0 %112
    %116 = vset.pattern.permute.xlu0 0
    %117 = vperm.xlu0 %116, %v40
    %v118 = vpop.permute.xlu0 %117
    %121 = vset.pattern.permute.xlu0 0
    %122 = vperm.xlu0 %121, %v41
    %v123 = vpop.permute.xlu0 %122
    %126 = vset.pattern.permute.xlu0 0
    %127 = vperm.xlu0 %126, %v42
    %v128 = vpop.permute.xlu0 %127
    %vm130 = vcmask 64512
    %v132 = vsel %vm130, %v70, 0
    %v135 = vsel %vm130, %v71, 0
    %v138 = vsel %vm130, %v72, 0
    %v141 = vsel %vm130, %v73, 0
    %v144 = vsel %vm130, %v74, 0
    %v147 = vsel %vm130, %v75, 0
    %v150 = vsel %vm130, %v76, 0
    %v153 = vsel %vm130, %v77, 0
    %v156 = vsel %vm130, %v78, 0
    %v159 = vsel %vm130, %v79, 0
    %161 = vmatprep.subr.mxu0 0.0
    %162 = vmatpush1.msra.mxu0 %v69
    %163 = vmatprep.subr.mxu0 0.0
    %164 = vmatpush1.msra.mxu0 0.0
    %165 = vmatprep.subr.mxu0 0.0
    %166 = vmatpush1.msra.mxu0 0.0
    %167 = vmatprep.subr.mxu0 0.0
    %168 = vmatpush1.msra.mxu0 0.0
    %169 = vmatprep.subr.mxu0 0.0
    %170 = vmatpush1.msra.mxu0 0.0
    %171 = vmatprep.subr.mxu0 0.0
    %172 = vmatpush1.msra.mxu0 0.0
    %173 = vmatprep.subr.mxu0 0.0
    %174 = vmatpush1.msra.mxu0 0.0
    %175 = vmatprep.subr.mxu0 0.0
    %176 = vmatpush1.msra.mxu0 0.0
    %177 = vmatprep.subr.mxu0 0.0
    %178 = vmatpush1.msra.mxu0 0.0
    %179 = vmatprep.subr.mxu0 0.0
    %180 = vmatpush1.msra.mxu0 0.0
    %181 = vmatprep.subr.mxu0 0.0
    %182 = vmatpush1.msra.mxu0 0.0
    %183 = vmatprep.subr.mxu0 0.0
    %184 = vmatpush1.msra.mxu0 0.0
    %185 = vmatprep.subr.mxu0 0.0
    %186 = vmatpush1.msra.mxu0 0.0
    %187 = vmatprep.subr.mxu0 0.0
    %188 = vmatpush1.msra.mxu0 0.0
    %189 = vmatprep.subr.mxu0 0.0
    %190 = vmatpush1.msra.mxu0 0.0
    %191 = vmatprep.subr.mxu0 0.0
    %192 = vmatpush1.msra.mxu0 0.0
    %193 = vmatprep.subr.mxu0 0.0
    %194 = vmatpush1.msra.mxu0 0.0
    %195 = vmatprep.subr.mxu0 0.0
    %196 = vmatpush1.msra.mxu0 0.0
    %197 = vmatprep.subr.mxu0 0.0
    %198 = vmatpush1.msra.mxu0 0.0
    %199 = vmatprep.subr.mxu0 0.0
    %200 = vmatpush1.msra.mxu0 0.0
    %201 = vmatprep.subr.mxu0 0.0
    %202 = vmatpush1.msra.mxu0 0.0
    %203 = vmatprep.subr.mxu0 0.0
    %204 = vmatpush1.msra.mxu0 0.0
    %205 = vmatprep.subr.mxu0 0.0
    %206 = vmatpush1.msra.mxu0 0.0
    %207 = vmatprep.subr.mxu0 0.0
    %208 = vmatpush1.msra.mxu0 0.0
    %209 = vmatprep.subr.mxu0 0.0
    %210 = vmatpush1.msra.mxu0 0.0
    %211 = vmatprep.subr.mxu0 0.0
    %212 = vmatpush1.msra.mxu0 0.0
    %213 = vmatprep.subr.mxu0 0.0
    %214 = vmatpush1.msra.mxu0 0.0
    %215 = vmatprep.subr.mxu0 0.0
    %216 = vmatpush1.msra.mxu0 0.0
    %217 = vmatprep.subr.mxu0 0.0
    %218 = vmatpush1.msra.mxu0 0.0
    %219 = vmatprep.subr.mxu0 0.0
    %220 = vmatpush1.msra.mxu0 0.0
    %221 = vmatprep.subr.mxu0 0.0
    %222 = vmatpush1.msra.mxu0 0.0
    %223 = vmatprep.subr.mxu0 0.0
    %224 = vmatpush1.msra.mxu0 0.0
    %225 = vmatprep.mubr.f32.mxu0 0.0
    %226 = vmatmul.mubr.f32.gmra.mrb[0].mxu0 %v132
    %v227 = vpop.f32.mrb[0].mxu0
    %v228 = vadd.f32 %v83, %v227
    %v229 = vpop.f32.mrb[0].mxu0
    %230 = vmatprep.mubr.f32.mxu0 0.0
    %231 = vmatmul.mubr.f32.gmra.mrb[0].mxu0 %v135
    %v232 = vpop.f32.mrb[0].mxu0
    %v233 = vadd.f32 %v88, %v232
    %v234 = vpop.f32.mrb[0].mxu0
    %235 = vmatprep.mubr.f32.mxu0 0.0
    %236 = vmatmul.mubr.f32.gmra.mrb[0].mxu0 %v138
    %v237 = vpop.f32.mrb[0].mxu0
    %v238 = vadd.f32 %v93, %v237
    %v239 = vpop.f32.mrb[0].mxu0
    %240 = vmatprep.mubr.f32.mxu0 0.0
    %241 = vmatmul.mubr.f32.gmra.mrb[0].mxu0 %v141
    %v242 = vpop.f32.mrb[0].mxu0
    %v243 = vadd.f32 %v98, %v242
    %v244 = vpop.f32.mrb[0].mxu0
    %245 = vmatprep.mubr.f32.mxu0 0.0
    %246 = vmatmul.mubr.f32.gmra.mrb[0].mxu0 %v144
    %v247 = vpop.f32.mrb[0].mxu0
    %v248 = vadd.f32 %v103, %v247
    %v249 = vpop.f32.mrb[0].mxu0
    %250 = vmatprep.mubr.f32.mxu0 0.0
    %251 = vmatmul.mubr.f32.gmra.mrb[0].mxu0 %v147
    %v252 = vpop.f32.mrb[0].mxu0
    %v253 = vadd.f32 %v108, %v252
    %v254 = vpop.f32.mrb[0].mxu0
    %255 = vmatprep.mubr.f32.mxu0 0.0
    %256 = vmatmul.mubr.f32.gmra.mrb[0].mxu0 %v150
    %v257 = vpop.f32.mrb[0].mxu0
    %v258 = vadd.f32 %v113, %v257
    %v259 = vpop.f32.mrb[0].mxu0
    %260 = vmatprep.mubr.f32.mxu0 0.0
    %261 = vmatmul.mubr.f32.gmra.mrb[0].mxu0 %v153
    %v262 = vpop.f32.mrb[0].mxu0
    %v263 = vadd.f32 %v118, %v262
    %v264 = vpop.f32.mrb[0].mxu0
    %265 = vmatprep.mubr.f32.mxu0 0.0
    %266 = vmatmul.mubr.f32.gmra.mrb[0].mxu0 %v156
    %v267 = vpop.f32.mrb[0].mxu0
    %v268 = vadd.f32 %v123, %v267
    %v269 = vpop.f32.mrb[0].mxu0
    %270 = vmatprep.mubr.f32.mxu0 0.0
    %271 = vmatmul.mubr.f32.gmra.mrb[0].mxu0 %v159
    %v272 = vpop.f32.mrb[0].mxu0
    %v273 = vadd.f32 %v128, %v272
    %v274 = vpop.f32.mrb[0].mxu0
    %275 = vdwg.mxu0
    %v276 = vmax.f32 %v228, 0.0
    %v277 = vmax.f32 %v233, 0.0
    %v278 = vmax.f32 %v238, 0.0
    %v279 = vmax.f32 %v243, 0.0
    %v280 = vmax.f32 %v248, 0.0
    %v281 = vmax.f32 %v253, 0.0
    %v282 = vmax.f32 %v258, 0.0
    %v283 = vmax.f32 %v263, 0.0
    %v284 = vmax.f32 %v268, 0.0
    %v285 = vmax.f32 %v273, 0.0
    %v286 = vld [vmem:[%s3] sm:$0xff]
    %v287 = vld [vmem:[%s3 + $0x8] sm:$0xff]
    %v288 = vld [vmem:[%s3 + $0x10] sm:$0xff]
    %v289 = vld [vmem:[%s3 + $0x18] sm:$0xff]
    %v290 = vld [vmem:[%s3 + $0x20] sm:$0xff]
    %v291 = vld [vmem:[%s3 + $0x28] sm:$0xff]
    %v292 = vld [vmem:[%s3 + $0x30] sm:$0xff]
    %v293 = vld [vmem:[%s3 + $0x38] sm:$0xff]
    %v294 = vld [vmem:[%s3 + $0x40] sm:$0xff]
    %v295 = vld [vmem:[%s3 + $0x48] sm:$0xff]
    %v296 = vld [vmem:[%s3 + $0x50] sm:$0xff]
    %v297 = vld [vmem:[%s3 + $0x58] sm:$0xff]
    %v298 = vld [vmem:[%s3 + $0x60] sm:$0xff]
    %v299 = vld [vmem:[%s3 + $0x68] sm:$0xff]
    %v300 = vld [vmem:[%s3 + $0x70] sm:$0xff]
    %302 = vset.pattern.permute.xlu0 0
    %303 = vperm.xlu0 %302, %v43
    %v304 = vpop.permute.xlu0 %303
    %307 = vset.pattern.permute.xlu0 0
    %308 = vperm.xlu0 %307, %v44
    %v309 = vpop.permute.xlu0 %308
    %312 = vset.pattern.permute.xlu0 0
    %313 = vperm.xlu0 %312, %v45
    %v314 = vpop.permute.xlu0 %313
    %317 = vset.pattern.permute.xlu0 0
    %318 = vperm.xlu0 %317, %v46
    %v319 = vpop.permute.xlu0 %318
    %322 = vset.pattern.permute.xlu0 0
    %323 = vperm.xlu0 %322, %v47
    %v324 = vpop.permute.xlu0 %323
    %327 = vset.pattern.permute.xlu0 0
    %328 = vperm.xlu0 %327, %v48
    %v329 = vpop.permute.xlu0 %328
    %332 = vset.pattern.permute.xlu0 0
    %333 = vperm.xlu0 %332, %v49
    %v334 = vpop.permute.xlu0 %333
    %337 = vset.pattern.permute.xlu0 0
    %338 = vperm.xlu0 %337, %v50
    %v339 = vpop.permute.xlu0 %338
    %342 = vset.pattern.permute.xlu0 0
    %343 = vperm.xlu0 %342, %v51
    %v344 = vpop.permute.xlu0 %343
    %347 = vset.pattern.permute.xlu0 0
    %348 = vperm.xlu0 %347, %v52
    %v349 = vpop.permute.xlu0 %348
    %352 = vset.pattern.permute.xlu0 0
    %353 = vperm.xlu0 %352, %v53
    %v354 = vpop.permute.xlu0 %353
    %357 = vset.pattern.permute.xlu0 0
    %358 = vperm.xlu0 %357, %v54
    %v359 = vpop.permute.xlu0 %358
    %362 = vset.pattern.permute.xlu0 0
    %363 = vperm.xlu0 %362, %v55
    %v364 = vpop.permute.xlu0 %363
    %367 = vset.pattern.permute.xlu0 0
    %368 = vperm.xlu0 %367, %v56
    %v369 = vpop.permute.xlu0 %368
    %372 = vset.pattern.permute.xlu0 0
    %373 = vperm.xlu0 %372, %v57
    %v374 = vpop.permute.xlu0 %373
    %vm376 = vcmask 654336
    %v378 = vsel %vm376, %v286, 0
    %v381 = vsel %vm376, %v287, 0
    %v384 = vsel %vm376, %v288, 0
    %v387 = vsel %vm376, %v289, 0
    %v390 = vsel %vm376, %v290, 0
    %v393 = vsel %vm376, %v291, 0
    %v396 = vsel %vm376, %v292, 0
    %v399 = vsel %vm376, %v293, 0
    %v402 = vsel %vm376, %v294, 0
    %v405 = vsel %vm376, %v295, 0
    %v408 = vsel %vm376, %v296, 0
    %v411 = vsel %vm376, %v297, 0
    %v414 = vsel %vm376, %v298, 0
    %v417 = vsel %vm376, %v299, 0
    %v420 = vsel %vm376, %v300, 0
    %422 = vmatprep.subr.mxu0 0.0
    %423 = vmatpush1.msra.mxu0 %v276
    %424 = vmatprep.subr.mxu0 0.0
    %425 = vmatpush1.msra.mxu0 %v277
    %426 = vmatprep.subr.mxu0 0.0
    %427 = vmatpush1.msra.mxu0 %v278
    %428 = vmatprep.subr.mxu0 0.0
    %429 = vmatpush1.msra.mxu0 %v279
    %430 = vmatprep.subr.mxu0 0.0
    %431 = vmatpush1.msra.mxu0 %v280
    %432 = vmatprep.subr.mxu0 0.0
    %433 = vmatpush1.msra.mxu0 %v281
    %434 = vmatprep.subr.mxu0 0.0
    %435 = vmatpush1.msra.mxu0 %v282
    %436 = vmatprep.subr.mxu0 0.0
    %437 = vmatpush1.msra.mxu0 %v283
    %438 = vmatprep.subr.mxu0 0.0
    %439 = vmatpush1.msra.mxu0 %v284
    %440 = vmatprep.subr.mxu0 0.0
    %441 = vmatpush1.msra.mxu0 %v285
    %442 = vmatprep.subr.mxu0 0.0
    %443 = vmatpush1.msra.mxu0 0.0
    %444 = vmatprep.subr.mxu0 0.0
    %445 = vmatpush1.msra.mxu0 0.0
    %446 = vmatprep.subr.mxu0 0.0
    %447 = vmatpush1.msra.mxu0 0.0
    %448 = vmatprep.subr.mxu0 0.0
    %449 = vmatpush1.msra.mxu0 0.0
    %450 = vmatprep.subr.mxu0 0.0
    %451 = vmatpush1.msra.mxu0 0.0
    %452 = vmatprep.subr.mxu0 0.0
    %453 = vmatpush1.msra.mxu0 0.0
    %454 = vmatprep.subr.mxu0 0.0
    %455 = vmatpush1.msra.mxu0 0.0
    %456 = vmatprep.subr.mxu0 0.0
    %457 = vmatpush1.msra.mxu0 0.0
    %458 = vmatprep.subr.mxu0 0.0
    %459 = vmatpush1.msra.mxu0 0.0
    %460 = vmatprep.subr.mxu0 0.0
    %461 = vmatpush1.msra.mxu0 0.0
    %462 = vmatprep.subr.mxu0 0.0
    %463 = vmatpush1.msra.mxu0 0.0
    %464 = vmatprep.subr.mxu0 0.0
    %465 = vmatpush1.msra.mxu0 0.0
    %466 = vmatprep.subr.mxu0 0.0
    %467 = vmatpush1.msra.mxu0 0.0
    %468 = vmatprep.subr.mxu0 0.0
    %469 = vmatpush1.msra.mxu0 0.0
    %470 = vmatprep.subr.mxu0 0.0
    %471 = vmatpush1.msra.mxu0 0.0
    %472 = vmatprep.subr.mxu0 0.0
    %473 = vmatpush1.msra.mxu0 0.0
    %474 = vmatprep.subr.mxu0 0.0
    %475 = vmatpush1.msra.mxu0 0.0
    %476 = vmatprep.subr.mxu0 0.0
    %477 = vmatpush1.msra.mxu0 0.0
    %478 = vmatprep.subr.mxu0 0.0
    %479 = vmatpush1.msra.mxu0 0.0
    %480 = vmatprep.subr.mxu0 0.0
    %481 = vmatpush1.msra.mxu0 0.0
    %482 = vmatprep.subr.mxu0 0.0
    %483 = vmatpush1.msra.mxu0 0.0
    %484 = vmatprep.subr.mxu0 0.0
    %485 = vmatpush1.msra.mxu0 0.0
    %486 = vmatprep.mubr.f32.mxu0 0.0
    %487 = vmatmul.mubr.f32.gmra.mrb[0].mxu0 %v378
    %v488 = vpop.f32.mrb[0].mxu0
    %v489 = vadd.f32 %v304, %v488
    %v490 = vpop.f32.mrb[0].mxu0
    %491 = vmatprep.mubr.f32.mxu0 0.0
    %492 = vmatmul.mubr.f32.gmra.mrb[0].mxu0 %v381
    %v493 = vpop.f32.mrb[0].mxu0
    %v494 = vadd.f32 %v309, %v493
    %v495 = vpop.f32.mrb[0].mxu0
    %496 = vmatprep.mubr.f32.mxu0 0.0
    %497 = vmatmul.mubr.f32.gmra.mrb[0].mxu0 %v384
    %v498 = vpop.f32.mrb[0].mxu0
    %v499 = vadd.f32 %v314, %v498
    %v500 = vpop.f32.mrb[0].mxu0
    %501 = vmatprep.mubr.f32.mxu0 0.0
    %502 = vmatmul.mubr.f32.gmra.mrb[0].mxu0 %v387
    %v503 = vpop.f32.mrb[0].mxu0
    %v504 = vadd.f32 %v319, %v503
    %v505 = vpop.f32.mrb[0].mxu0
    %506 = vmatprep.mubr.f32.mxu0 0.0
    %507 = vmatmul.mubr.f32.gmra.mrb[0].mxu0 %v390
    %v508 = vpop.f32.mrb[0].mxu0
    %v509 = vadd.f32 %v324, %v508
    %v510 = vpop.f32.mrb[0].mxu0
    %511 = vmatprep.mubr.f32.mxu0 0.0
    %512 = vmatmul.mubr.f32.gmra.mrb[0].mxu0 %v393
    %v513 = vpop.f32.mrb[0].mxu0
    %v514 = vadd.f32 %v329, %v513
    %v515 = vpop.f32.mrb[0].mxu0
    %516 = vmatprep.mubr.f32.mxu0 0.0
    %517 = vmatmul.mubr.f32.gmra.mrb[0].mxu0 %v396
    %v518 = vpop.f32.mrb[0].mxu0
    %v519 = vadd.f32 %v334, %v518
    %v520 = vpop.f32.mrb[0].mxu0
    %521 = vmatprep.mubr.f32.mxu0 0.0
    %522 = vmatmul.mubr.f32.gmra.mrb[0].mxu0 %v399
    %v523 = vpop.f32.mrb[0].mxu0
    %v524 = vadd.f32 %v339, %v523
    %v525 = vpop.f32.mrb[0].mxu0
    %526 = vmatprep.mubr.f32.mxu0 0.0
    %527 = vmatmul.mubr.f32.gmra.mrb[0].mxu0 %v402
    %v528 = vpop.f32.mrb[0].mxu0
    %v529 = vadd.f32 %v344, %v528
    %v530 = vpop.f32.mrb[0].mxu0
    %531 = vmatprep.mubr.f32.mxu0 0.0
    %532 = vmatmul.mubr.f32.gmra.mrb[0].mxu0 %v405
    %v533 = vpop.f32.mrb[0].mxu0
    %v534 = vadd.f32 %v349, %v533
    %v535 = vpop.f32.mrb[0].mxu0
    %536 = vmatprep.mubr.f32.mxu0 0.0
    %537 = vmatmul.mubr.f32.gmra.mrb[0].mxu0 %v408
    %v538 = vpop.f32.mrb[0].mxu0
    %v539 = vadd.f32 %v354, %v538
    %v540 = vpop.f32.mrb[0].mxu0
    %541 = vmatprep.mubr.f32.mxu0 0.0
    %542 = vmatmul.mubr.f32.gmra.mrb[0].mxu0 %v411
    %v543 = vpop.f32.mrb[0].mxu0
    %v544 = vadd.f32 %v359, %v543
    %v545 = vpop.f32.mrb[0].mxu0
    %546 = vmatprep.mubr.f32.mxu0 0.0
    %547 = vmatmul.mubr.f32.gmra.mrb[0].mxu0 %v414
    %v548 = vpop.f32.mrb[0].mxu0
    %v549 = vadd.f32 %v364, %v548
    %v550 = vpop.f32.mrb[0].mxu0
    %551 = vmatprep.mubr.f32.mxu0 0.0
    %552 = vmatmul.mubr.f32.gmra.mrb[0].mxu0 %v417
    %v553 = vpop.f32.mrb[0].mxu0
    %v554 = vadd.f32 %v369, %v553
    %v555 = vpop.f32.mrb[0].mxu0
    %556 = vmatprep.mubr.f32.mxu0 0.0
    %557 = vmatmul.mubr.f32.gmra.mrb[0].mxu0 %v420
    %v558 = vpop.f32.mrb[0].mxu0
    %v559 = vadd.f32 %v374, %v558
    %v560 = vpop.f32.mrb[0].mxu0
    %561 = vdwg.mxu0
    %v562 = vmax.f32 %v489, 0.0
    %v563 = vmax.f32 %v494, 0.0
    %v564 = vmax.f32 %v499, 0.0
    %v565 = vmax.f32 %v504, 0.0
    %v566 = vmax.f32 %v509, 0.0
    %v567 = vmax.f32 %v514, 0.0
    %v568 = vmax.f32 %v519, 0.0
    %v569 = vmax.f32 %v524, 0.0
    %v570 = vmax.f32 %v529, 0.0
    %v571 = vmax.f32 %v534, 0.0
    %v572 = vmax.f32 %v539, 0.0
    %v573 = vmax.f32 %v544, 0.0
    %v574 = vmax.f32 %v549, 0.0
    %v575 = vmax.f32 %v554, 0.0
    %v576 = vmax.f32 %v559, 0.0
    %v577 = vld [vmem:[%s5] sm:$0xff]
    %v578 = vld [vmem:[%s5 + $0x8] sm:$0xff]
    %v579 = vld [vmem:[%s5 + $0x10] sm:$0xff]
    %v580 = vld [vmem:[%s5 + $0x18] sm:$0xff]
    %v581 = vld [vmem:[%s5 + $0x20] sm:$0xff]
    %v582 = vld [vmem:[%s5 + $0x28] sm:$0xff]
    %v583 = vld [vmem:[%s5 + $0x30] sm:$0xff]
    %v584 = vld [vmem:[%s5 + $0x38] sm:$0xff]
    %v585 = vld [vmem:[%s5 + $0x40] sm:$0xff]
    %v586 = vld [vmem:[%s5 + $0x48] sm:$0xff]
    %588 = vset.pattern.permute.xlu0 0
    %589 = vperm.xlu0 %588, %v58
    %v590 = vpop.permute.xlu0 %589
    %593 = vset.pattern.permute.xlu0 0
    %594 = vperm.xlu0 %593, %v59
    %v595 = vpop.permute.xlu0 %594
    %598 = vset.pattern.permute.xlu0 0
    %599 = vperm.xlu0 %598, %v60
    %v600 = vpop.permute.xlu0 %599
    %603 = vset.pattern.permute.xlu0 0
    %604 = vperm.xlu0 %603, %v61
    %v605 = vpop.permute.xlu0 %604
    %608 = vset.pattern.permute.xlu0 0
    %609 = vperm.xlu0 %608, %v62
    %v610 = vpop.permute.xlu0 %609
    %613 = vset.pattern.permute.xlu0 0
    %614 = vperm.xlu0 %613, %v63
    %v615 = vpop.permute.xlu0 %614
    %618 = vset.pattern.permute.xlu0 0
    %619 = vperm.xlu0 %618, %v64
    %v620 = vpop.permute.xlu0 %619
    %623 = vset.pattern.permute.xlu0 0
    %624 = vperm.xlu0 %623, %v65
    %v625 = vpop.permute.xlu0 %624
    %628 = vset.pattern.permute.xlu0 0
    %629 = vperm.xlu0 %628, %v66
    %v630 = vpop.permute.xlu0 %629
    %633 = vset.pattern.permute.xlu0 0
    %634 = vperm.xlu0 %633, %v67
    %v635 = vpop.permute.xlu0 %634
    %vm637 = vcmask 982016
    %v639 = vsel %vm637, %v577, 0
    %v642 = vsel %vm637, %v578, 0
    %v645 = vsel %vm637, %v579, 0
    %v648 = vsel %vm637, %v580, 0
    %v651 = vsel %vm637, %v581, 0
    %v654 = vsel %vm637, %v582, 0
    %v657 = vsel %vm637, %v583, 0
    %v660 = vsel %vm637, %v584, 0
    %v663 = vsel %vm637, %v585, 0
    %v666 = vsel %vm637, %v586, 0
    %668 = vmatprep.subr.mxu0 0.0
    %669 = vmatpush1.msra.mxu0 %v562
    %670 = vmatprep.subr.mxu0 0.0
    %671 = vmatpush1.msra.mxu0 %v563
    %672 = vmatprep.subr.mxu0 0.0
    %673 = vmatpush1.msra.mxu0 %v564
    %674 = vmatprep.subr.mxu0 0.0
    %675 = vmatpush1.msra.mxu0 %v565
    %676 = vmatprep.subr.mxu0 0.0
    %677 = vmatpush1.msra.mxu0 %v566
    %678 = vmatprep.subr.mxu0 0.0
    %679 = vmatpush1.msra.mxu0 %v567
    %680 = vmatprep.subr.mxu0 0.0
    %681 = vmatpush1.msra.mxu0 %v568
    %682 = vmatprep.subr.mxu0 0.0
    %683 = vmatpush1.msra.mxu0 %v569
    %684 = vmatprep.subr.mxu0 0.0
    %685 = vmatpush1.msra.mxu0 %v570
    %686 = vmatprep.subr.mxu0 0.0
    %687 = vmatpush1.msra.mxu0 %v571
    %688 = vmatprep.subr.mxu0 0.0
    %689 = vmatpush1.msra.mxu0 %v572
    %690 = vmatprep.subr.mxu0 0.0
    %691 = vmatpush1.msra.mxu0 %v573
    %692 = vmatprep.subr.mxu0 0.0
    %693 = vmatpush1.msra.mxu0 %v574
    %694 = vmatprep.subr.mxu0 0.0
    %695 = vmatpush1.msra.mxu0 %v575
    %696 = vmatprep.subr.mxu0 0.0
    %697 = vmatpush1.msra.mxu0 %v576
    %698 = vmatprep.subr.mxu0 0.0
    %699 = vmatpush1.msra.mxu0 0.0
    %700 = vmatprep.subr.mxu0 0.0
    %701 = vmatpush1.msra.mxu0 0.0
    %702 = vmatprep.subr.mxu0 0.0
    %703 = vmatpush1.msra.mxu0 0.0
    %704 = vmatprep.subr.mxu0 0.0
    %705 = vmatpush1.msra.mxu0 0.0
    %706 = vmatprep.subr.mxu0 0.0
    %707 = vmatpush1.msra.mxu0 0.0
    %708 = vmatprep.subr.mxu0 0.0
    %709 = vmatpush1.msra.mxu0 0.0
    %710 = vmatprep.subr.mxu0 0.0
    %711 = vmatpush1.msra.mxu0 0.0
    %712 = vmatprep.subr.mxu0 0.0
    %713 = vmatpush1.msra.mxu0 0.0
    %714 = vmatprep.subr.mxu0 0.0
    %715 = vmatpush1.msra.mxu0 0.0
    %716 = vmatprep.subr.mxu0 0.0
    %717 = vmatpush1.msra.mxu0 0.0
    %718 = vmatprep.subr.mxu0 0.0
    %719 = vmatpush1.msra.mxu0 0.0
    %720 = vmatprep.subr.mxu0 0.0
    %721 = vmatpush1.msra.mxu0 0.0
    %722 = vmatprep.subr.mxu0 0.0
    %723 = vmatpush1.msra.mxu0 0.0
    %724 = vmatprep.subr.mxu0 0.0
    %725 = vmatpush1.msra.mxu0 0.0
    %726 = vmatprep.subr.mxu0 0.0
    %727 = vmatpush1.msra.mxu0 0.0
    %728 = vmatprep.subr.mxu0 0.0
    %729 = vmatpush1.msra.mxu0 0.0
    %730 = vmatprep.subr.mxu0 0.0
    %731 = vmatpush1.msra.mxu0 0.0
    %732 = vmatprep.mubr.f32.mxu0 0.0
    %733 = vmatmul.mubr.f32.gmra.mrb[0].mxu0 %v639
    %v734 = vpop.f32.mrb[0].mxu0
    %v735 = vadd.f32 %v590, %v734
    %v736 = vpop.f32.mrb[0].mxu0
    %737 = vmatprep.mubr.f32.mxu0 0.0
    %738 = vmatmul.mubr.f32.gmra.mrb[0].mxu0 %v642
    %v739 = vpop.f32.mrb[0].mxu0
    %v740 = vadd.f32 %v595, %v739
    %v741 = vpop.f32.mrb[0].mxu0
    %742 = vmatprep.mubr.f32.mxu0 0.0
    %743 = vmatmul.mubr.f32.gmra.mrb[0].mxu0 %v645
    %v744 = vpop.f32.mrb[0].mxu0
    %v745 = vadd.f32 %v600, %v744
    %v746 = vpop.f32.mrb[0].mxu0
    %747 = vmatprep.mubr.f32.mxu0 0.0
    %748 = vmatmul.mubr.f32.gmra.mrb[0].mxu0 %v648
    %v749 = vpop.f32.mrb[0].mxu0
    %v750 = vadd.f32 %v605, %v749
    %v751 = vpop.f32.mrb[0].mxu0
    %752 = vmatprep.mubr.f32.mxu0 0.0
    %753 = vmatmul.mubr.f32.gmra.mrb[0].mxu0 %v651
    %v754 = vpop.f32.mrb[0].mxu0
    %v755 = vadd.f32 %v610, %v754
    %v756 = vpop.f32.mrb[0].mxu0
    %757 = vmatprep.mubr.f32.mxu0 0.0
    %758 = vmatmul.mubr.f32.gmra.mrb[0].mxu0 %v654
    %v759 = vpop.f32.mrb[0].mxu0
    %v760 = vadd.f32 %v615, %v759
    %v761 = vpop.f32.mrb[0].mxu0
    %762 = vmatprep.mubr.f32.mxu0 0.0
    %763 = vmatmul.mubr.f32.gmra.mrb[0].mxu0 %v657
    %v764 = vpop.f32.mrb[0].mxu0
    %v765 = vadd.f32 %v620, %v764
    %v766 = vpop.f32.mrb[0].mxu0
    %767 = vmatprep.mubr.f32.mxu0 0.0
    %768 = vmatmul.mubr.f32.gmra.mrb[0].mxu0 %v660
    %v769 = vpop.f32.mrb[0].mxu0
    %v770 = vadd.f32 %v625, %v769
    %v771 = vpop.f32.mrb[0].mxu0
    %772 = vmatprep.mubr.f32.mxu0 0.0
    %773 = vmatmul.mubr.f32.gmra.mrb[0].mxu0 %v663
    %v774 = vpop.f32.mrb[0].mxu0
    %v775 = vadd.f32 %v630, %v774
    %v776 = vpop.f32.mrb[0].mxu0
    %777 = vmatprep.mubr.f32.mxu0 0.0
    %778 = vmatmul.mubr.f32.gmra.mrb[0].mxu0 %v666
    %v779 = vpop.f32.mrb[0].mxu0
    %v780 = vadd.f32 %v635, %v779
    %v781 = vpop.f32.mrb[0].mxu0
    %782 = vdwg.mxu0
    %v783 = vmax.f32 %v735, 0.0
    %v784 = vmax.f32 %v740, 0.0
    %v785 = vmax.f32 %v745, 0.0
    %v786 = vmax.f32 %v750, 0.0
    %v787 = vmax.f32 %v755, 0.0
    %v788 = vmax.f32 %v760, 0.0
    %v789 = vmax.f32 %v765, 0.0
    %v790 = vmax.f32 %v770, 0.0
    %v791 = vmax.f32 %v775, 0.0
    %v792 = vmax.f32 %v780, 0.0
    %v793 = vld [vmem:[%s7] sm:$0xf]
    %795 = vset.pattern.permute.xlu0 0
    %796 = vperm.xlu0 %795, %v68
    %v797 = vpop.permute.xlu0 %796
    %v800 = vsel %vm376, %v793, 0
    %802 = vmatprep.subr.mxu0 0.0
    %803 = vmatpush1.msra.mxu0 %v783
    %804 = vmatprep.subr.mxu0 0.0
    %805 = vmatpush1.msra.mxu0 %v784
    %806 = vmatprep.subr.mxu0 0.0
    %807 = vmatpush1.msra.mxu0 %v785
    %808 = vmatprep.subr.mxu0 0.0
    %809 = vmatpush1.msra.mxu0 %v786
    %810 = vmatprep.subr.mxu0 0.0
    %811 = vmatpush1.msra.mxu0 %v787
    %812 = vmatprep.subr.mxu0 0.0
    %813 = vmatpush1.msra.mxu0 %v788
    %814 = vmatprep.subr.mxu0 0.0
    %815 = vmatpush1.msra.mxu0 %v789
    %816 = vmatprep.subr.mxu0 0.0
    %817 = vmatpush1.msra.mxu0 %v790
    %818 = vmatprep.subr.mxu0 0.0
    %819 = vmatpush1.msra.mxu0 %v791
    %820 = vmatprep.subr.mxu0 0.0
    %821 = vmatpush1.msra.mxu0 %v792
    %822 = vmatprep.subr.mxu0 0.0
    %823 = vmatpush1.msra.mxu0 0.0
    %824 = vmatprep.subr.mxu0 0.0
    %825 = vmatpush1.msra.mxu0 0.0
    %826 = vmatprep.subr.mxu0 0.0
    %827 = vmatpush1.msra.mxu0 0.0
    %828 = vmatprep.subr.mxu0 0.0
    %829 = vmatpush1.msra.mxu0 0.0
    %830 = vmatprep.subr.mxu0 0.0
    %831 = vmatpush1.msra.mxu0 0.0
    %832 = vmatprep.subr.mxu0 0.0
    %833 = vmatpush1.msra.mxu0 0.0
    %834 = vmatprep.subr.mxu0 0.0
    %835 = vmatpush1.msra.mxu0 0.0
    %836 = vmatprep.subr.mxu0 0.0
    %837 = vmatpush1.msra.mxu0 0.0
    %838 = vmatprep.subr.mxu0 0.0
    %839 = vmatpush1.msra.mxu0 0.0
    %840 = vmatprep.subr.mxu0 0.0
    %841 = vmatpush1.msra.mxu0 0.0
    %842 = vmatprep.subr.mxu0 0.0
    %843 = vmatpush1.msra.mxu0 0.0
    %844 = vmatprep.subr.mxu0 0.0
    %845 = vmatpush1.msra.mxu0 0.0
    %846 = vmatprep.subr.mxu0 0.0
    %847 = vmatpush1.msra.mxu0 0.0
    %848 = vmatprep.subr.mxu0 0.0
    %849 = vmatpush1.msra.mxu0 0.0
    %850 = vmatprep.subr.mxu0 0.0
    %851 = vmatpush1.msra.mxu0 0.0
    %852 = vmatprep.subr.mxu0 0.0
    %853 = vmatpush1.msra.mxu0 0.0
    %854 = vmatprep.subr.mxu0 0.0
    %855 = vmatpush1.msra.mxu0 0.0
    %856 = vmatprep.subr.mxu0 0.0
    %857 = vmatpush1.msra.mxu0 0.0
    %858 = vmatprep.subr.mxu0 0.0
    %859 = vmatpush1.msra.mxu0 0.0
    %860 = vmatprep.subr.mxu0 0.0
    %861 = vmatpush1.msra.mxu0 0.0
    %862 = vmatprep.subr.mxu0 0.0
    %863 = vmatpush1.msra.mxu0 0.0
    %864 = vmatprep.subr.mxu0 0.0
    %865 = vmatpush1.msra.mxu0 0.0
    %866 = vmatprep.mubr.f32.mxu0 0.0
    %867 = vmatmul.mubr.f32.gmra.mrb[0].mxu0 %v800
    %v868 = vpop.f32.mrb[0].mxu0
    %v869 = vadd.f32 %v797, %v868
    %v870 = vpop.f32.mrb[0].mxu0
    %871 = vdwg.mxu0
    %vm872 = vcmask 60416
    %873 = vst.msk [vmem:[#allocation2] sm:$0xf] %vm872, %v869
    // Predicated region
    $region38: #{net_forward.1} parent=1 // pred_check
      _
    $region39: #{net_forward.1} parent=1 // pred_check_branch
      %875 = sbr.rel (0) target = $region41
    $region40: #{net_forward.1} parent=1 // pred_region
      %s877 = ssub.s32 64, 64
      %878 = vsyncadd [#allocation3], %s877
      %s880 = sshll.u32 [#allocation2], 4
      %s881 = int_to_ptr.vmem [resolvable:$true] %s880
      %883 = dma.vmem_to_hbm [thread:$0]  %s881, 64, %s9, [#allocation3]
    $region41: #{net_forward.1} parent=1 // pred_fallthru
      _
    // Predicated region
    $region42: #{net_forward.1} parent=1 // pred_check
      _
    $region43: #{net_forward.1} parent=1 // pred_check_branch
      %885 = sbr.rel (0) target = $region45
    $region44: #{net_forward.1} parent=1 // pred_region
      %886 = dma.done [#allocation3], 64
    $region45: #{net_forward.1} parent=1 // pred_fallthru
      _
    %887 = vsyncpa [#allocation3], 1

</llo_original>
